<compile_context>
chip_gen: v5e
topology: v5e:2x2
jax: 0.10.0
libtpu: 0.0.40
codegen_flags: <defaults>
</compile_context>

<pallas_src>
import functools

import jax
import jax.numpy as jnp
from jax.experimental import pallas as pl
from jax.experimental.pallas import tpu as pltpu


def _round_up(a, b):
    return (a + b - 1) // b * b


def _timeconv_kernel(x_ref, w_ref, b_ref, o_ref):
    # One lane-dense matmul per M-tile; bias added in f32 before the final cast.
    acc = jnp.dot(x_ref[...], w_ref[...], preferred_element_type=jnp.float32)
    o_ref[...] = (acc + b_ref[...]).astype(o_ref.dtype)


@functools.partial(jax.jit, static_argnames=("padding", "stride", "tm_target"))
def time_conv(x, weight, bias, *, padding=0, stride=1, tm_target=512):
    """
    x      : (T, B, C_in)        -- (Timesteps, Batchsize, Hiddensize)
    weight : (C_out, C_in, K)    -- PyTorch Conv1d weight layout
    bias   : (C_out,)
    returns: (T_out, B, C_out)
    """
    T, B, C_in = x.shape
    C_out, C_in_w, K = weight.shape
    assert C_in == C_in_w

    T_out = (T + 2 * padding - K) // stride + 1
    assert T_out >= 1
    M = T_out * B

    # ---- plain-JAX glue: pad time, gather K strided taps, im2col ----
    x_pad = jnp.pad(x, ((padding, padding), (0, 0), (0, 0)))
    taps = []
    for k in range(K):
        taps.append(
            jax.lax.slice(
                x_pad,
                (k, 0, 0),
                (k + (T_out - 1) * stride + 1, B, C_in),
                (stride, 1, 1),
            )
        )
    # (T_out, B, K, C_in) -> (M, K*C_in); row layout is k-major then c_in.
    x_unf = jnp.stack(taps, axis=2).reshape(M, K * C_in)

    # weight (C_out, C_in, K) -> (K*C_in, C_out), matching the x_unf row layout.
    w = jnp.transpose(weight, (2, 1, 0)).reshape(K * C_in, C_out)

    # ---- pad to TPU-friendly, lane-dense shapes ----
    KC = K * C_in
    KC_p = _round_up(KC, 128)         # contraction dim: unmasked vld + deeper MXU feed
    C_out_p = _round_up(C_out, 128)   # output lanes: unmasked vst
    tm = min(tm_target, _round_up(M, 8))   # sublane-aligned M tile (sweep 256-1024)
    M_p = _round_up(M, tm)

    x_unf_p = jnp.pad(x_unf, ((0, M_p - M), (0, KC_p - KC)))
    w_p = jnp.pad(w, ((0, KC_p - KC), (0, C_out_p - C_out)))
    b_p = jnp.pad(bias, (0, C_out_p - C_out)).reshape(1, C_out_p)

    out_flat = pl.pallas_call(
        _timeconv_kernel,
        out_shape=jax.ShapeDtypeStruct((M_p, C_out_p), x.dtype),
        grid_spec=pltpu.PrefetchScalarGridSpec(
            num_scalar_prefetch=0,
            grid=(M_p // tm,),
            in_specs=[
                pl.BlockSpec((tm, KC_p), lambda m: (m, 0)),
                pl.BlockSpec((KC_p, C_out_p), lambda m: (0, 0)),  # resident weights
                pl.BlockSpec((1, C_out_p), lambda m: (0, 0)),     # resident bias
            ],
            out_specs=pl.BlockSpec((tm, C_out_p), lambda m: (m, 0)),
        ),
        compiler_params=pltpu.CompilerParams(
            dimension_semantics=("parallel",),   # megacore sharding on v7x
            vmem_limit_bytes=64 << 20,
        ),
    )(x_unf_p, w_p, b_p)

    # Strip padding, restore (T_out, B, C_out).
    return out_flat[:M, :C_out].reshape(T_out, B, C_out)


def _reference_time_conv(x, weight, bias, *, padding=0, stride=1):
    """Pure-JAX reference matching PyTorch TimeConv.forward semantics."""
    x_ncw = jnp.transpose(x, (1, 2, 0))  # (B, C_in, T)
    out = jax.lax.conv_general_dilated(
        x_ncw,
        weight,  # (C_out, C_in, K) == OIW
        window_strides=(stride,),
        padding=[(padding, padding)],
        dimension_numbers=("NCW", "OIW", "NCW"),
    )
    out = out + bias[None, :, None]
    return jnp.transpose(out, (2, 0, 1))  # (T_out, B, C_out)


if __name__ == "__main__":
    # Small shapes consistent with the module: (Timesteps, Batchsize, Hiddensize)
    T, B, C_in = 16, 4, 32
    C_out, K, padding, stride = 32, 3, 1, 1

    key = jax.random.PRNGKey(0)
    kx, kw, kb = jax.random.split(key, 3)

    x = jax.random.normal(kx, (T, B, C_in), dtype=jnp.float32)
    bound = 1.0 / (C_in * K) ** 0.5
    weight = jax.random.uniform(kw, (C_out, C_in, K), jnp.float32, -bound, bound)
    bias = jax.random.uniform(kb, (C_out,), jnp.float32, -bound, bound)

    out = time_conv(x, weight, bias, padding=padding, stride=stride)
    out = jax.block_until_ready(out)

    ref = _reference_time_conv(x, weight, bias, padding=padding, stride=stride)
    assert out.shape == ref.shape, (out.shape, ref.shape)
    assert jnp.allclose(out, ref, atol=1e-4, rtol=1e-4)

    print("KERNEL_OK")
</pallas_src>

<mosaic_0001>
module attributes {stable_mosaic.version = 11 : i64} {
  func.func @_timeconv_kernel(%arg0: i32, %arg1: memref<64x128xf32, #tpu.memory_space<vmem>>, %arg2: memref<128x128xf32, #tpu.memory_space<vmem>>, %arg3: memref<1x128xf32, #tpu.memory_space<vmem>>, %arg4: memref<64x128xf32, #tpu.memory_space<vmem>>) attributes {dimension_semantics = [#tpu.dimension_semantics<parallel>], iteration_bounds = array<i64: 1>, scalar_prefetch = 0 : i64, scratch_operands = 0 : i64, tpu.core_type = #tpu.core_type<tc>, window_params = [{transform_indices = @transform_0, window_bounds = array<i64: 64, 128>}, {pipeline_mode = #tpu.pipeline_mode<synchronous>, transform_indices = @transform_1, window_bounds = array<i64: 128, 128>}, {pipeline_mode = #tpu.pipeline_mode<synchronous>, transform_indices = @transform_2, window_bounds = array<i64: 1, 128>}, {transform_indices = @transform_3, window_bounds = array<i64: 64, 128>}]} {
    %c0 = arith.constant 0 : index
    %c0_0 = arith.constant 0 : index
    %0 = vector.load %arg1[%c0, %c0_0] : memref<64x128xf32, #tpu.memory_space<vmem>>, vector<64x128xf32>
    %c0_1 = arith.constant 0 : index
    %c0_2 = arith.constant 0 : index
    %1 = vector.load %arg2[%c0_1, %c0_2] : memref<128x128xf32, #tpu.memory_space<vmem>>, vector<128x128xf32>
    %cst = arith.constant dense<0.000000e+00> : vector<64x128xf32>
    %2 = tpu.matmul %0, %1, %cst {dimension_numbers = #tpu.dot_dimension_numbers<[1], [0], [0], [1], [0, 0, 1, 1], [], []>} : vector<64x128xf32>, vector<128x128xf32>, vector<64x128xf32> -> vector<64x128xf32>
    %c0_3 = arith.constant 0 : index
    %c0_4 = arith.constant 0 : index
    %3 = vector.load %arg3[%c0_3, %c0_4] : memref<1x128xf32, #tpu.memory_space<vmem>>, vector<1x128xf32>
    %4 = vector.broadcast %3 : vector<1x128xf32> to vector<64x128xf32>
    %5 = arith.addf %2, %4 : vector<64x128xf32>
    %c0_5 = arith.constant 0 : index
    %c0_6 = arith.constant 0 : index
    %6 = vector.load %arg4[%c0_5, %c0_6] : memref<64x128xf32, #tpu.memory_space<vmem>>, vector<64x128xf32>
    tpu.vector_store %arg4[%c0_5, %c0_6], %5 {strides = array<i32>} : memref<64x128xf32, #tpu.memory_space<vmem>>, vector<64x128xf32>,
    return
  }
  func.func @transform_0(%arg0: i32) -> (i32, i32) {
    %c0_i32 = arith.constant 0 : i32
    %c0_i32_0 = arith.constant 0 : i32
    return %arg0, %c0_i32 : i32, i32
  }
  func.func @transform_1(%arg0: i32) -> (i32, i32) {
    %c0_i32 = arith.constant 0 : i32
    %c0_i32_0 = arith.constant 0 : i32
    %c0_i32_1 = arith.constant 0 : i32
    return %c0_i32, %c0_i32_0 : i32, i32
  }
  func.func @transform_2(%arg0: i32) -> (i32, i32) {
    %c0_i32 = arith.constant 0 : i32
    %c0_i32_0 = arith.constant 0 : i32
    %c0_i32_1 = arith.constant 0 : i32
    return %c0_i32, %c0_i32_0 : i32, i32
  }
  func.func @transform_3(%arg0: i32) -> (i32, i32) {
    %c0_i32 = arith.constant 0 : i32
    %c0_i32_0 = arith.constant 0 : i32
    return %arg0, %c0_i32 : i32, i32
  }
}

</mosaic_0001>

<llo_original>
// kernel: time_conv.1
$region0: #{time_conv.1}
  #allocation0 [shape = 'u32[]', space=smem, size = 0x4, offset = 0x4, fixed_abs, tag = 'smem constant byte address 0x4 - core index']
  #allocation1 [shape = 'u32[72,128]{1,0:T(1,128)}', space=vmem, size = 0x9000, scoped, tag = 'internal scratch']
  %s0 = inlined_call_operand.vmem [shape: f32[64,128], index: 0, kind: input, shape index: {}]
  %s1 = inlined_call_operand.vmem [shape: f32[128,128], index: 1, kind: input, shape index: {}]
  %s2 = inlined_call_operand.vmem [shape: f32[1,128], index: 2, kind: input, shape index: {}]
  %s3 = inlined_call_operand.hbm [shape: f32[64,128], index: 3, kind: output, shape index: {}]
  %s4 = sld [smem:[#allocation0]]
  $region22: #{time_conv.1} parent=0
    _
  %s6 = ssub.s32 1, %s4
  %s7 = scalar_select 0, %s6, %s4
  $region1: #{time_conv.1} parent=0
    #allocation2 [shape = 'u8[32768]{0}', space=vmem, size = 0x8000, scoped, tag = 'output window, operand 0, single buffered']
    #allocation3 [shape = 's32[1]{0}', space=sflag, size = 0x4, scoped, tag = 'scoped memory for time_conv.1']
    %8 = vsyncpa [#allocation3], 0
    // Predicated region
    $region2: #{time_conv.1} parent=1 // pred_check
      _
    $region3: #{time_conv.1} parent=1 // pred_check_branch
      %10 = sbr.rel (0) target = $region5
    $region4: #{time_conv.1} parent=1 // pred_region
      _
    $region5: #{time_conv.1} parent=1 // pred_fallthru
      _
    // Predicated region
    $region6: #{time_conv.1} parent=1 // pred_check
      _
    $region7: #{time_conv.1} parent=1 // pred_check_branch
      %12 = sbr.rel (0) target = $region9
    $region8: #{time_conv.1} parent=1 // pred_region
      _
    $region9: #{time_conv.1} parent=1 // pred_fallthru
      _
    // Predicated region
    $region10: #{time_conv.1} parent=1 // pred_check
      _
    $region11: #{time_conv.1} parent=1 // pred_check_branch
      %14 = sbr.rel (0) target = $region13
    $region12: #{time_conv.1} parent=1 // pred_region
      _
    $region13: #{time_conv.1} parent=1 // pred_fallthru
      _
    %v15 = vld [vmem:[%s0] sm:$0xff]
    %v16 = vld [vmem:[%s0 + $0x8] sm:$0xff]
    %v17 = vld [vmem:[%s0 + $0x10] sm:$0xff]
    %v18 = vld [vmem:[%s0 + $0x18] sm:$0xff]
    %v19 = vld [vmem:[%s0 + $0x20] sm:$0xff]
    %v20 = vld [vmem:[%s0 + $0x28] sm:$0xff]
    %v21 = vld [vmem:[%s0 + $0x30] sm:$0xff]
    %v22 = vld [vmem:[%s0 + $0x38] sm:$0xff]
    %v23 = vld [vmem:[%s1] sm:$0xff]
    %v24 = vld [vmem:[%s1 + $0x8] sm:$0xff]
    %v25 = vld [vmem:[%s1 + $0x10] sm:$0xff]
    %v26 = vld [vmem:[%s1 + $0x18] sm:$0xff]
    %v27 = vld [vmem:[%s1 + $0x20] sm:$0xff]
    %v28 = vld [vmem:[%s1 + $0x28] sm:$0xff]
    %v29 = vld [vmem:[%s1 + $0x30] sm:$0xff]
    %v30 = vld [vmem:[%s1 + $0x38] sm:$0xff]
    %v31 = vld [vmem:[%s1 + $0x40] sm:$0xff]
    %v32 = vld [vmem:[%s1 + $0x48] sm:$0xff]
    %v33 = vld [vmem:[%s1 + $0x50] sm:$0xff]
    %v34 = vld [vmem:[%s1 + $0x58] sm:$0xff]
    %v35 = vld [vmem:[%s1 + $0x60] sm:$0xff]
    %v36 = vld [vmem:[%s1 + $0x68] sm:$0xff]
    %v37 = vld [vmem:[%s1 + $0x70] sm:$0xff]
    %v38 = vld [vmem:[%s1 + $0x78] sm:$0xff]
    %v39 = vld [vmem:[%s2] sm:$0x1]
    %v41 = vperm.slane %v39, 0
    %43 = vmatpush.msra.mxu0 %v38
    %44 = vmatpush.msra.mxu0 %v37
    %45 = vmatpush.msra.mxu0 %v36
    %46 = vmatpush.msra.mxu0 %v35
    %47 = vmatpush.msra.mxu0 %v34
    %48 = vmatpush.msra.mxu0 %v33
    %49 = vmatpush.msra.mxu0 %v32
    %50 = vmatpush.msra.mxu0 %v31
    %51 = vmatpush.msra.mxu0 %v30
    %52 = vmatpush.msra.mxu0 %v29
    %53 = vmatpush.msra.mxu0 %v28
    %54 = vmatpush.msra.mxu0 %v27
    %55 = vmatpush.msra.mxu0 %v26
    %56 = vmatpush.msra.mxu0 %v25
    %57 = vmatpush.msra.mxu0 %v24
    %58 = vmatpush.msra.mxu0 %v23
    %59 = vmatmul.f32.gmra.mxu0 %v15
    %v60 = vpop.f32.mrf.mxu0
    %v61 = vadd.f32 %v41, %v60
    %62 = vmatmul.f32.gmra.mxu0 %v16
    %v63 = vpop.f32.mrf.mxu0
    %v64 = vadd.f32 %v41, %v63
    %65 = vmatmul.f32.gmra.mxu0 %v17
    %v66 = vpop.f32.mrf.mxu0
    %v67 = vadd.f32 %v41, %v66
    %68 = vmatmul.f32.gmra.mxu0 %v18
    %v69 = vpop.f32.mrf.mxu0
    %v70 = vadd.f32 %v41, %v69
    %71 = vmatmul.f32.gmra.mxu0 %v19
    %v72 = vpop.f32.mrf.mxu0
    %v73 = vadd.f32 %v41, %v72
    %74 = vmatmul.f32.gmra.mxu0 %v20
    %v75 = vpop.f32.mrf.mxu0
    %v76 = vadd.f32 %v41, %v75
    %77 = vmatmul.f32.gmra.mxu0 %v21
    %v78 = vpop.f32.mrf.mxu0
    %v79 = vadd.f32 %v41, %v78
    %80 = vmatmul.f32.gmra.mxu0 %v22
    %v81 = vpop.f32.mrf.mxu0
    %v82 = vadd.f32 %v41, %v81
    %83 = vdwg.mxu0
    %84 = vst [vmem:[#allocation2] sm:$0xff] %v61
    %85 = vst [vmem:[#allocation2 + $0x8] sm:$0xff] %v64
    %86 = vst [vmem:[#allocation2 + $0x10] sm:$0xff] %v67
    %87 = vst [vmem:[#allocation2 + $0x18] sm:$0xff] %v70
    %88 = vst [vmem:[#allocation2 + $0x20] sm:$0xff] %v73
    %89 = vst [vmem:[#allocation2 + $0x28] sm:$0xff] %v76
    %90 = vst [vmem:[#allocation2 + $0x30] sm:$0xff] %v79
    %91 = vst [vmem:[#allocation2 + $0x38] sm:$0xff] %v82
    // Predicated region
    $region14: #{time_conv.1} parent=1 // pred_check
      _
    $region15: #{time_conv.1} parent=1 // pred_check_branch
      %93 = sbr.rel (0) target = $region17
    $region16: #{time_conv.1} parent=1 // pred_region
      %95 = vsyncadd [#allocation3], 0
      %s96 = sshll.u32 [#allocation2], 4
      %s97 = int_to_ptr.vmem [resolvable:$true] %s96
      %s98 = sshll.u32 %s3, 4
      %s99 = int_to_ptr.hbm [resolvable:$true] %s98
      %104 = dma.vmem_to_hbm [thread:$0]  %s97, 1024, %s99, [#allocation3], 128, 128, 8
    $region17: #{time_conv.1} parent=1 // pred_fallthru
      _
    // Predicated region
    $region18: #{time_conv.1} parent=1 // pred_check
      _
    $region19: #{time_conv.1} parent=1 // pred_check_branch
      %106 = sbr.rel (0) target = $region21
    $region20: #{time_conv.1} parent=1 // pred_region
      %108 = dma.done [#allocation3], 1024
    $region21: #{time_conv.1} parent=1 // pred_fallthru
      _
    %109 = vsyncpa [#allocation3], 1

</llo_original>
